<compile_context>
chip_gen: v7x
topology: tpu7x:2x2x1
jax: 0.10.0
libtpu: 0.0.40
codegen_flags: <defaults>
</compile_context>

<pallas_src>
import jax
import jax.numpy as jnp
from jax.experimental import pallas as pl
from jax.experimental.pallas import tpu as pltpu

_LANE = 128


def _make_embed_kernel(pack: int, num_types: int):
    """Kernel factory closing over the static pack factor and num_atoms_type."""

    def kernel(off_ref, w_ref, o_ref):
        # off_ref: (rows, pack*T) int32 -- off[r, j*T + i] is the stacked-table
        #          column (i*F + idx) for node r*pack + j, atom type i.
        # w_ref:   (kpad, E)            -- stacked embedding tables (bf16/f32).
        # o_ref:   (rows, pack*E) f32   -- pack node embeddings per 128-lane row.
        off = off_ref[...]
        w = w_ref[...]
        rows = off.shape[0]
        kpad, emb = w.shape
        # One iota per tile, only kpad wide (band-split): every compare below
        # runs over a single node's band, not the full pack*kpad width.
        # NOTE(review #7): deliberately NOT hoisted into a @pl.when(pid==0)
        # VMEM scratch -- the M axis is "parallel", so under megacore the
        # second TensorCore never executes step 0 and such a scratch would be
        # uninitialized there.  After the band split the iota is a few % of
        # the compare work anyway.
        col = jax.lax.broadcasted_iota(jnp.int32, (rows, kpad), 1)
        for j in range(pack):
            # Multi-hot for node j of every pack-group.  Indices are clamped
            # in the wrapper, so within one node the T hit columns are in
            # disjoint [i*F, (i+1)*F) bands -> boolean OR == exact sum.
            hit = col == off[:, j * num_types:j * num_types + 1]
            for i in range(1, num_types):
                s = j * num_types + i
                hit = hit | (col == off[:, s:s + 1])
            # One-hot is exact in bf16 -> native bf16 MXU path when the table
            # is bf16; accumulate in f32 on the MXU.
            part = jnp.dot(hit.astype(w.dtype), w,
                           preferred_element_type=jnp.float32)
            # Disjoint E-wide output column group for node j (review #5's
            # "implicit block-diagonal"); the HBM-facing output block is still
            # a full 128-lane-wide slab.
            o_ref[:, j * emb:(j + 1) * emb] = part

    return kernel


def node_feature_embedding(node_feature, weights, *, tm=2048,
                           weight_dtype=jnp.bfloat16):
    """node_feature: [B, N, T] int; weights: [T, F, E] float -> [B, N, E] f32.

    weight_dtype=jnp.bfloat16 (default) runs the table on the native bf16 MXU
    path (~2^-9 relative rounding of the table); pass jnp.float32 for bit
    parity with the f32 PyTorch module.
    """
    B, N, T = node_feature.shape
    Tw, F, E = weights.shape
    assert T == Tw
    M = B * N

    # Lane-packing factor: PACK nodes share one 128-lane output row.
    pack = _LANE // E if (E < _LANE and _LANE % E == 0) else 1
    # Per-node band width: stacked-table rows, lane-aligned (>= one vreg group).
    kpad = pl.cdiv(T * F, _LANE) * _LANE

    # Node tile: multiple of 8*pack (8 sublanes of packed output rows).  Big
    # tiles amortize the ~0.35us per-grid-step overhead (review #3), but cap
    # so grid_m >= 2 whenever possible so both v7x TensorCores get work on the
    # "parallel" M axis (review #4).  Ragged tails are handled by wrapper-side
    # padding, never by shrinking the tile.
    unit = 8 * pack
    m_units = pl.cdiv(M, unit)
    target_units = max(1, tm // unit)
    tm_units = (max(1, min(target_units, pl.cdiv(m_units, 2)))
                if m_units >= 2 else 1)
    tm_eff = tm_units * unit
    grid_m = pl.cdiv(m_units, tm_units)
    m_pad = grid_m * tm_eff
    rows = tm_eff // pack                 # packed output rows per tile (% 8 == 0)

    # ---- wrapper-side layout plumbing (tiny int adds / free reshapes) ----
    idx = node_feature.reshape(M, T).astype(jnp.int32)
    # Clamp OOB indices (PyTorch nn.Embedding would raise; clamping prevents a
    # bad index from bleeding into another atom-type band).
    idx = jnp.clip(idx, 0, F - 1)
    idx = jnp.pad(idx, ((0, m_pad - M), (0, 0)))   # padded tail -> row-0 lookups, discarded
    # Column id for (node m, type i) inside that node's own band: i*F + idx.
    off = idx + (jnp.arange(T, dtype=jnp.int32) * F)[None, :]
    off = off.reshape(m_pad // pack, pack * T)

    # Stacked tables -> a single (kpad, E) matrix.  No pack^2 block-diagonal
    # replication; kept VMEM-resident once via a constant index_map.
    w_flat = weights.reshape(T * F, E).astype(weight_dtype)
    w_pad = jnp.zeros((kpad, E), weight_dtype).at[:T * F, :].set(w_flat)

    kernel = _make_embed_kernel(pack, T)
    out = pl.pallas_call(
        kernel,
        out_shape=jax.ShapeDtypeStruct((m_pad // pack, pack * E), jnp.float32),
        grid_spec=pltpu.PrefetchScalarGridSpec(
            num_scalar_prefetch=0,
            grid=(grid_m,),
            in_specs=[
                pl.BlockSpec((rows, pack * T), lambda m: (m, 0)),
                # Constant index_map -> table is DMA'd to VMEM once and reused
                # on every grid step.  (Double-buffering this tiny block costs
                # only ~2*kpad*E*2 bytes, so the default buffering is kept.)
                # TODO(synk): for tables approaching v7x's 64 MiB VMEM, add an
                # 'arbitrary' F-tiled reduction grid axis instead of keeping
                # the whole stacked table resident.
                pl.BlockSpec((kpad, E), lambda m: (0, 0)),
            ],
            out_specs=pl.BlockSpec((rows, pack * E), lambda m: (m, 0)),
        ),
        compiler_params=pltpu.CompilerParams(
            dimension_semantics=("parallel",),
            vmem_limit_bytes=32 * 1024 * 1024),
    )(off, w_pad)

    # Free reshape back: packed row r, columns [j*E:(j+1)*E] = node r*pack + j.
    return out.reshape(m_pad, E)[:M].reshape(B, N, E)


def init_weights(seed, num_atoms_type, max_features, emb_dim):
    # Xavier-uniform init matching the nn.Embedding list's shapes.
    # TODO(synk): bit-exact reproduction of torch.manual_seed RNG is not
    # possible in JAX; distribution/shape parity only.
    key = jax.random.PRNGKey(seed)
    bound = (6.0 / (max_features + emb_dim)) ** 0.5
    return jax.random.uniform(
        key, (num_atoms_type, max_features, emb_dim),
        minval=-bound, maxval=bound, dtype=jnp.float32)


if __name__ == "__main__":
    # Small shapes consistent with the module's forward.
    B, N = 2, 8                 # batch, nodes per graph
    num_atoms_type = 4          # T
    max_features = 16           # F
    emb_dim = 32                # E

    key = jax.random.PRNGKey(0)
    k_idx, _ = jax.random.split(key)
    node_feature = jax.random.randint(
        k_idx, (B, N, num_atoms_type), 0, max_features, dtype=jnp.int32)

    weights = init_weights(seed=0, num_atoms_type=num_atoms_type,
                           max_features=max_features, emb_dim=emb_dim)

    out = node_feature_embedding(node_feature, weights)
    out = jax.block_until_ready(out)
    assert out.shape == (B, N, emb_dim)

    # Reference 1 (tight): same bf16-rounded table the kernel multiplies by.
    # Reference 2 (loose): the pure-f32 module semantics (bf16 table rounding
    # shifts results by ~0.2-0.4% relative at most).
    w_bf = weights.astype(jnp.bfloat16).astype(jnp.float32)
    ref_bf = jnp.zeros((B, N, emb_dim), jnp.float32)
    ref_f32 = jnp.zeros((B, N, emb_dim), jnp.float32)
    for i in range(num_atoms_type):
        ref_bf = ref_bf + jnp.take(w_bf[i], node_feature[:, :, i], axis=0)
        ref_f32 = ref_f32 + jnp.take(weights[i], node_feature[:, :, i], axis=0)
    assert jnp.allclose(out, ref_bf, atol=1e-5, rtol=1e-5)
    assert jnp.allclose(out, ref_f32, atol=1e-2, rtol=1e-2)

    print("KERNEL_OK")
</pallas_src>

<mosaic_0001>
module attributes {stable_mosaic.version = 11 : i64} {
  func.func @kernel(%arg0: i32, %arg1: memref<8x16xi32, #tpu.memory_space<vmem>>, %arg2: memref<128x32xbf16, #tpu.memory_space<vmem>>, %arg3: memref<8x128xf32, #tpu.memory_space<vmem>>) attributes {dimension_semantics = [#tpu.dimension_semantics<parallel>], iteration_bounds = array<i64: 1>, scalar_prefetch = 0 : i64, scratch_operands = 0 : i64, tpu.core_type = #tpu.core_type<tc>, window_params = [{transform_indices = @transform_0, window_bounds = array<i64: 8, 16>}, {pipeline_mode = #tpu.pipeline_mode<synchronous>, transform_indices = @transform_1, window_bounds = array<i64: 128, 32>}, {transform_indices = @transform_2, window_bounds = array<i64: 8, 128>}]} {
    %c0 = arith.constant 0 : index
    %c0_0 = arith.constant 0 : index
    %0 = vector.load %arg1[%c0, %c0_0] : memref<8x16xi32, #tpu.memory_space<vmem>>, vector<8x16xi32>
    %c0_1 = arith.constant 0 : index
    %c0_2 = arith.constant 0 : index
    %1 = vector.load %arg2[%c0_1, %c0_2] : memref<128x32xbf16, #tpu.memory_space<vmem>>, vector<128x32xbf16>
    %2 = tpu.iota {dimensions = array<i32: 1>} : vector<8x128xi32>
    %3 = vector.extract_strided_slice %0 {offsets = [0, 0], sizes = [8, 1], strides = [1, 1]} : vector<8x16xi32> to vector<8x1xi32>
    %4 = vector.broadcast %3 : vector<8x1xi32> to vector<8x128xi32>
    %5 = arith.cmpi eq, %2, %4 : vector<8x128xi32>
    %6 = vector.extract_strided_slice %0 {offsets = [0, 1], sizes = [8, 1], strides = [1, 1]} : vector<8x16xi32> to vector<8x1xi32>
    %7 = vector.broadcast %6 : vector<8x1xi32> to vector<8x128xi32>
    %8 = arith.cmpi eq, %2, %7 : vector<8x128xi32>
    %9 = arith.ori %5, %8 : vector<8x128xi1>
    %10 = vector.extract_strided_slice %0 {offsets = [0, 2], sizes = [8, 1], strides = [1, 1]} : vector<8x16xi32> to vector<8x1xi32>
    %11 = vector.broadcast %10 : vector<8x1xi32> to vector<8x128xi32>
    %12 = arith.cmpi eq, %2, %11 : vector<8x128xi32>
    %13 = arith.ori %9, %12 : vector<8x128xi1>
    %14 = vector.extract_strided_slice %0 {offsets = [0, 3], sizes = [8, 1], strides = [1, 1]} : vector<8x16xi32> to vector<8x1xi32>
    %15 = vector.broadcast %14 : vector<8x1xi32> to vector<8x128xi32>
    %16 = arith.cmpi eq, %2, %15 : vector<8x128xi32>
    %17 = arith.ori %13, %16 : vector<8x128xi1>
    %18 = arith.extui %17 : vector<8x128xi1> to vector<8x128xi32>
    %19 = arith.sitofp %18 : vector<8x128xi32> to vector<8x128xf32>
    %20 = arith.truncf %19 : vector<8x128xf32> to vector<8x128xbf16>
    %cst = arith.constant dense<0.000000e+00> : vector<8x32xf32>
    %21 = tpu.matmul %20, %1, %cst {dimension_numbers = #tpu.dot_dimension_numbers<[1], [0], [0], [1], [0, 0, 1, 1], [], []>} : vector<8x128xbf16>, vector<128x32xbf16>, vector<8x32xf32> -> vector<8x32xf32>
    %c0_3 = arith.constant 0 : index
    %c0_4 = arith.constant 0 : index
    %22 = vector.load %arg3[%c0_3, %c0_4] : memref<8x128xf32, #tpu.memory_space<vmem>>, vector<8x32xf32>
    tpu.vector_store %arg3[%c0_3, %c0_4], %21 {strides = array<i32>} : memref<8x128xf32, #tpu.memory_space<vmem>>, vector<8x32xf32>,
    %23 = vector.extract_strided_slice %0 {offsets = [0, 4], sizes = [8, 1], strides = [1, 1]} : vector<8x16xi32> to vector<8x1xi32>
    %24 = vector.broadcast %23 : vector<8x1xi32> to vector<8x128xi32>
    %25 = arith.cmpi eq, %2, %24 : vector<8x128xi32>
    %26 = vector.extract_strided_slice %0 {offsets = [0, 5], sizes = [8, 1], strides = [1, 1]} : vector<8x16xi32> to vector<8x1xi32>
    %27 = vector.broadcast %26 : vector<8x1xi32> to vector<8x128xi32>
    %28 = arith.cmpi eq, %2, %27 : vector<8x128xi32>
    %29 = arith.ori %25, %28 : vector<8x128xi1>
    %30 = vector.extract_strided_slice %0 {offsets = [0, 6], sizes = [8, 1], strides = [1, 1]} : vector<8x16xi32> to vector<8x1xi32>
    %31 = vector.broadcast %30 : vector<8x1xi32> to vector<8x128xi32>
    %32 = arith.cmpi eq, %2, %31 : vector<8x128xi32>
    %33 = arith.ori %29, %32 : vector<8x128xi1>
    %34 = vector.extract_strided_slice %0 {offsets = [0, 7], sizes = [8, 1], strides = [1, 1]} : vector<8x16xi32> to vector<8x1xi32>
    %35 = vector.broadcast %34 : vector<8x1xi32> to vector<8x128xi32>
    %36 = arith.cmpi eq, %2, %35 : vector<8x128xi32>
    %37 = arith.ori %33, %36 : vector<8x128xi1>
    %38 = arith.extui %37 : vector<8x128xi1> to vector<8x128xi32>
    %39 = arith.sitofp %38 : vector<8x128xi32> to vector<8x128xf32>
    %40 = arith.truncf %39 : vector<8x128xf32> to vector<8x128xbf16>
    %cst_5 = arith.constant dense<0.000000e+00> : vector<8x32xf32>
    %41 = tpu.matmul %40, %1, %cst_5 {dimension_numbers = #tpu.dot_dimension_numbers<[1], [0], [0], [1], [0, 0, 1, 1], [], []>} : vector<8x128xbf16>, vector<128x32xbf16>, vector<8x32xf32> -> vector<8x32xf32>
    %c0_6 = arith.constant 0 : index
    %c32 = arith.constant 32 : index
    %42 = vector.load %arg3[%c0_6, %c32] : memref<8x128xf32, #tpu.memory_space<vmem>>, vector<8x32xf32>
    tpu.vector_store %arg3[%c0_6, %c32], %41 {strides = array<i32>} : memref<8x128xf32, #tpu.memory_space<vmem>>, vector<8x32xf32>,
    %43 = vector.extract_strided_slice %0 {offsets = [0, 8], sizes = [8, 1], strides = [1, 1]} : vector<8x16xi32> to vector<8x1xi32>
    %44 = vector.broadcast %43 : vector<8x1xi32> to vector<8x128xi32>
    %45 = arith.cmpi eq, %2, %44 : vector<8x128xi32>
    %46 = vector.extract_strided_slice %0 {offsets = [0, 9], sizes = [8, 1], strides = [1, 1]} : vector<8x16xi32> to vector<8x1xi32>
    %47 = vector.broadcast %46 : vector<8x1xi32> to vector<8x128xi32>
    %48 = arith.cmpi eq, %2, %47 : vector<8x128xi32>
    %49 = arith.ori %45, %48 : vector<8x128xi1>
    %50 = vector.extract_strided_slice %0 {offsets = [0, 10], sizes = [8, 1], strides = [1, 1]} : vector<8x16xi32> to vector<8x1xi32>
    %51 = vector.broadcast %50 : vector<8x1xi32> to vector<8x128xi32>
    %52 = arith.cmpi eq, %2, %51 : vector<8x128xi32>
    %53 = arith.ori %49, %52 : vector<8x128xi1>
    %54 = vector.extract_strided_slice %0 {offsets = [0, 11], sizes = [8, 1], strides = [1, 1]} : vector<8x16xi32> to vector<8x1xi32>
    %55 = vector.broadcast %54 : vector<8x1xi32> to vector<8x128xi32>
    %56 = arith.cmpi eq, %2, %55 : vector<8x128xi32>
    %57 = arith.ori %53, %56 : vector<8x128xi1>
    %58 = arith.extui %57 : vector<8x128xi1> to vector<8x128xi32>
    %59 = arith.sitofp %58 : vector<8x128xi32> to vector<8x128xf32>
    %60 = arith.truncf %59 : vector<8x128xf32> to vector<8x128xbf16>
    %cst_7 = arith.constant dense<0.000000e+00> : vector<8x32xf32>
    %61 = tpu.matmul %60, %1, %cst_7 {dimension_numbers = #tpu.dot_dimension_numbers<[1], [0], [0], [1], [0, 0, 1, 1], [], []>} : vector<8x128xbf16>, vector<128x32xbf16>, vector<8x32xf32> -> vector<8x32xf32>
    %c0_8 = arith.constant 0 : index
    %c64 = arith.constant 64 : index
    %62 = vector.load %arg3[%c0_8, %c64] : memref<8x128xf32, #tpu.memory_space<vmem>>, vector<8x32xf32>
    tpu.vector_store %arg3[%c0_8, %c64], %61 {strides = array<i32>} : memref<8x128xf32, #tpu.memory_space<vmem>>, vector<8x32xf32>,
    %63 = vector.extract_strided_slice %0 {offsets = [0, 12], sizes = [8, 1], strides = [1, 1]} : vector<8x16xi32> to vector<8x1xi32>
    %64 = vector.broadcast %63 : vector<8x1xi32> to vector<8x128xi32>
    %65 = arith.cmpi eq, %2, %64 : vector<8x128xi32>
    %66 = vector.extract_strided_slice %0 {offsets = [0, 13], sizes = [8, 1], strides = [1, 1]} : vector<8x16xi32> to vector<8x1xi32>
    %67 = vector.broadcast %66 : vector<8x1xi32> to vector<8x128xi32>
    %68 = arith.cmpi eq, %2, %67 : vector<8x128xi32>
    %69 = arith.ori %65, %68 : vector<8x128xi1>
    %70 = vector.extract_strided_slice %0 {offsets = [0, 14], sizes = [8, 1], strides = [1, 1]} : vector<8x16xi32> to vector<8x1xi32>
    %71 = vector.broadcast %70 : vector<8x1xi32> to vector<8x128xi32>
    %72 = arith.cmpi eq, %2, %71 : vector<8x128xi32>
    %73 = arith.ori %69, %72 : vector<8x128xi1>
    %74 = vector.extract_strided_slice %0 {offsets = [0, 15], sizes = [8, 1], strides = [1, 1]} : vector<8x16xi32> to vector<8x1xi32>
    %75 = vector.broadcast %74 : vector<8x1xi32> to vector<8x128xi32>
    %76 = arith.cmpi eq, %2, %75 : vector<8x128xi32>
    %77 = arith.ori %73, %76 : vector<8x128xi1>
    %78 = arith.extui %77 : vector<8x128xi1> to vector<8x128xi32>
    %79 = arith.sitofp %78 : vector<8x128xi32> to vector<8x128xf32>
    %80 = arith.truncf %79 : vector<8x128xf32> to vector<8x128xbf16>
    %cst_9 = arith.constant dense<0.000000e+00> : vector<8x32xf32>
    %81 = tpu.matmul %80, %1, %cst_9 {dimension_numbers = #tpu.dot_dimension_numbers<[1], [0], [0], [1], [0, 0, 1, 1], [], []>} : vector<8x128xbf16>, vector<128x32xbf16>, vector<8x32xf32> -> vector<8x32xf32>
    %c0_10 = arith.constant 0 : index
    %c96 = arith.constant 96 : index
    %82 = vector.load %arg3[%c0_10, %c96] : memref<8x128xf32, #tpu.memory_space<vmem>>, vector<8x32xf32>
    tpu.vector_store %arg3[%c0_10, %c96], %81 {strides = array<i32>} : memref<8x128xf32, #tpu.memory_space<vmem>>, vector<8x32xf32>,
    return
  }
  func.func @transform_0(%arg0: i32) -> (i32, i32) {
    %c0_i32 = arith.constant 0 : i32
    %c0_i32_0 = arith.constant 0 : i32
    return %arg0, %c0_i32 : i32, i32
  }
  func.func @transform_1(%arg0: i32) -> (i32, i32) {
    %c0_i32 = arith.constant 0 : i32
    %c0_i32_0 = arith.constant 0 : i32
    %c0_i32_1 = arith.constant 0 : i32
    return %c0_i32, %c0_i32_0 : i32, i32
  }
  func.func @transform_2(%arg0: i32) -> (i32, i32) {
    %c0_i32 = arith.constant 0 : i32
    %c0_i32_0 = arith.constant 0 : i32
    return %arg0, %c0_i32 : i32, i32
  }
}

</mosaic_0001>

<llo_original>
// kernel: tpu_custom_call.1
$region0: #{tpu_custom_call.1}
  #allocation0 [shape = 'u32[]', space=smem, size = 0x4, offset = 0x4, fixed_abs, tag = 'smem constant byte address 0x4 - core index']
  #allocation1 [shape = 'u32[144,128]{1,0:T(1,128)}', space=vmem, size = 0x12000, scoped, tag = 'internal scratch']
  %s0 = inlined_call_operand.vmem [shape: s32[8,16], index: 0, kind: input, shape index: {}]
  %s1 = inlined_call_operand.vmem [shape: bf16[128,32], index: 1, kind: input, shape index: {}]
  %s2 = inlined_call_operand.hbm [shape: f32[8,128], index: 2, kind: output, shape index: {}]
  %s3 = sld [smem:[#allocation0]]
  $region18: #{tpu_custom_call.1} parent=0
    _
  %s5 = ssub.s32 1, %s3
  %s6 = scalar_select 0, %s5, %s3
  $region1: #{tpu_custom_call.1} parent=0
    #allocation2 [shape = 'u8[4096]{0}', space=vmem, size = 0x1000, scoped, tag = 'output window, operand 0, single buffered']
    #allocation3 [shape = 's32[1]{0}', space=sflag, size = 0x4, scoped, tag = 'scoped memory for tpu_custom_call.1']
    %7 = vsyncpa [#allocation3], 0
    // Predicated region
    $region2: #{tpu_custom_call.1} parent=1 // pred_check
      _
    $region3: #{tpu_custom_call.1} parent=1 // pred_check_branch
      %9 = sbr.rel (0) target = $region5
    $region4: #{tpu_custom_call.1} parent=1 // pred_region
      _
    $region5: #{tpu_custom_call.1} parent=1 // pred_fallthru
      _
    // Predicated region
    $region6: #{tpu_custom_call.1} parent=1 // pred_check
      _
    $region7: #{tpu_custom_call.1} parent=1 // pred_check_branch
      %11 = sbr.rel (0) target = $region9
    $region8: #{tpu_custom_call.1} parent=1 // pred_region
      _
    $region9: #{tpu_custom_call.1} parent=1 // pred_fallthru
      _
    %v13 = vld [vmem:[%s0] sm:$0xff]
    %v14 = vld [vmem:[%s1] sm:$0xf]
    %v15 = vld [vmem:[%s1 + $0x4] sm:$0xf]
    %v16 = vld [vmem:[%s1 + $0x8] sm:$0xf]
    %v17 = vld [vmem:[%s1 + $0xc] sm:$0xf]
    %v18 = vld [vmem:[%s1 + $0x10] sm:$0xf]
    %v19 = vld [vmem:[%s1 + $0x14] sm:$0xf]
    %v20 = vld [vmem:[%s1 + $0x18] sm:$0xf]
    %v21 = vld [vmem:[%s1 + $0x1c] sm:$0xf]
    %v22 = vld [vmem:[%s1 + $0x20] sm:$0xf]
    %v23 = vld [vmem:[%s1 + $0x24] sm:$0xf]
    %v24 = vld [vmem:[%s1 + $0x28] sm:$0xf]
    %v25 = vld [vmem:[%s1 + $0x2c] sm:$0xf]
    %v26 = vld [vmem:[%s1 + $0x30] sm:$0xf]
    %v27 = vld [vmem:[%s1 + $0x34] sm:$0xf]
    %v28 = vld [vmem:[%s1 + $0x38] sm:$0xf]
    %v29 = vld [vmem:[%s1 + $0x3c] sm:$0xf]
    %v30 = vlaneseq
    %v31 = vand.u32 %v30, 127
    %32 = vset.pattern.permute.xlu0 0
    %33 = vperm.xlu0 %32, %v13
    %v34 = vpop.permute.xlu0 %33
    %vm35 = vcmp.eq.s32.totalorder %v31, %v34
    %36 = vset.pattern.permute.xlu0 1
    %37 = vperm.xlu0 %36, %v13
    %v38 = vpop.permute.xlu0 %37
    %vm39 = vcmp.eq.s32.totalorder %v31, %v38
    %vm40 = vmor %vm35, %vm39
    %41 = vset.pattern.permute.xlu0 2
    %42 = vperm.xlu0 %41, %v13
    %v43 = vpop.permute.xlu0 %42
    %vm44 = vcmp.eq.s32.totalorder %v31, %v43
    %vm45 = vmor %vm40, %vm44
    %46 = vset.pattern.permute.xlu0 3
    %47 = vperm.xlu0 %46, %v13
    %v48 = vpop.permute.xlu0 %47
    %vm49 = vcmp.eq.s32.totalorder %v31, %v48
    %vm50 = vmor %vm45, %vm49
    %v51 = vsel %vm50, 1, 0
    %v52 = vcvt.s32.f32 %v51
    %v53 = vpack.c.bf16 %v52, %v52
    %v70 = vunpack.c.l.b16 %v14
    %v71 = vunpack.c.l.b16 %v15
    %v72 = vunpack.c.l.b16 %v16
    %v73 = vunpack.c.l.b16 %v17
    %v74 = vunpack.c.l.b16 %v18
    %v75 = vunpack.c.l.b16 %v19
    %v76 = vunpack.c.l.b16 %v20
    %v77 = vunpack.c.l.b16 %v21
    %v78 = vunpack.c.l.b16 %v22
    %v79 = vunpack.c.l.b16 %v23
    %v80 = vunpack.c.l.b16 %v24
    %v81 = vunpack.c.l.b16 %v25
    %v82 = vunpack.c.l.b16 %v26
    %v83 = vunpack.c.l.b16 %v27
    %v84 = vunpack.c.l.b16 %v28
    %v85 = vunpack.c.l.b16 %v29
    %v86 = vpack.c.b16 %v71, %v70
    %v87 = vpack.c.b16 %v73, %v72
    %v88 = vpack.c.b16 %v75, %v74
    %v89 = vpack.c.b16 %v77, %v76
    %v90 = vpack.c.b16 %v79, %v78
    %v91 = vpack.c.b16 %v81, %v80
    %v92 = vpack.c.b16 %v83, %v82
    %v93 = vpack.c.b16 %v85, %v84
    %102 = vmatprep.subr.bf16.mxu0 0
    %103 = vmatpush1.bf16.msra.mxu0 %v86
    %104 = vmatprep.subr.bf16.mxu0 0
    %105 = vmatpush1.bf16.msra.mxu0 %v87
    %106 = vmatprep.subr.bf16.mxu0 0
    %107 = vmatpush1.bf16.msra.mxu0 %v88
    %108 = vmatprep.subr.bf16.mxu0 0
    %109 = vmatpush1.bf16.msra.mxu0 %v89
    %110 = vmatprep.subr.bf16.mxu0 0
    %111 = vmatpush1.bf16.msra.mxu0 %v90
    %112 = vmatprep.subr.bf16.mxu0 0
    %113 = vmatpush1.bf16.msra.mxu0 %v91
    %114 = vmatprep.subr.bf16.mxu0 0
    %115 = vmatpush1.bf16.msra.mxu0 %v92
    %116 = vmatprep.subr.bf16.mxu0 0
    %117 = vmatpush1.bf16.msra.mxu0 %v93
    %118 = vmatprep.subr.bf16.mxu0 0
    %119 = vmatpush1.bf16.msra.mxu0 0
    %120 = vmatprep.subr.bf16.mxu0 0
    %121 = vmatpush1.bf16.msra.mxu0 0
    %122 = vmatprep.subr.bf16.mxu0 0
    %123 = vmatpush1.bf16.msra.mxu0 0
    %124 = vmatprep.subr.bf16.mxu0 0
    %125 = vmatpush1.bf16.msra.mxu0 0
    %126 = vmatprep.subr.bf16.mxu0 0
    %127 = vmatpush1.bf16.msra.mxu0 0
    %128 = vmatprep.subr.bf16.mxu0 0
    %129 = vmatpush1.bf16.msra.mxu0 0
    %130 = vmatprep.subr.bf16.mxu0 0
    %131 = vmatpush1.bf16.msra.mxu0 0
    %132 = vmatprep.subr.bf16.mxu0 0
    %133 = vmatpush1.bf16.msra.mxu0 0
    %134 = vmatprep.mubr.bf16.mxu0 0
    %135 = vmatmul.mubr.bf16.gmra.mrb[0].mxu0 %v53
    %v136 = vpop.f32.mrb[0].mxu0
    %v137 = vadd.f32 0.0, %v136
    %v138 = vpop.f32.mrb[0].mxu0
    %v139 = vpop.f32.mrb[0].mxu0
    %v140 = vpop.f32.mrb[0].mxu0
    %141 = vdwg.mxu0
    %vm142 = vcmask 261120
    %143 = vst.msk [vmem:[#allocation2] sm:$0xff] %vm142, %v137
    %144 = vset.pattern.permute.xlu0 4
    %145 = vperm.xlu0 %144, %v13
    %v146 = vpop.permute.xlu0 %145
    %vm147 = vcmp.eq.s32.totalorder %v31, %v146
    %148 = vset.pattern.permute.xlu0 5
    %149 = vperm.xlu0 %148, %v13
    %v150 = vpop.permute.xlu0 %149
    %vm151 = vcmp.eq.s32.totalorder %v31, %v150
    %vm152 = vmor %vm147, %vm151
    %153 = vset.pattern.permute.xlu0 6
    %154 = vperm.xlu0 %153, %v13
    %v155 = vpop.permute.xlu0 %154
    %vm156 = vcmp.eq.s32.totalorder %v31, %v155
    %vm157 = vmor %vm152, %vm156
    %158 = vset.pattern.permute.xlu0 7
    %159 = vperm.xlu0 %158, %v13
    %v160 = vpop.permute.xlu0 %159
    %vm161 = vcmp.eq.s32.totalorder %v31, %v160
    %vm162 = vmor %vm157, %vm161
    %v163 = vsel %vm162, 1, 0
    %v164 = vcvt.s32.f32 %v163
    %v165 = vpack.c.bf16 %v164, %v164
    %166 = vmatprep.subr.bf16.mxu0 0
    %167 = vmatpush1.bf16.msra.mxu0 %v86
    %168 = vmatprep.subr.bf16.mxu0 0
    %169 = vmatpush1.bf16.msra.mxu0 %v87
    %170 = vmatprep.subr.bf16.mxu0 0
    %171 = vmatpush1.bf16.msra.mxu0 %v88
    %172 = vmatprep.subr.bf16.mxu0 0
    %173 = vmatpush1.bf16.msra.mxu0 %v89
    %174 = vmatprep.subr.bf16.mxu0 0
    %175 = vmatpush1.bf16.msra.mxu0 %v90
    %176 = vmatprep.subr.bf16.mxu0 0
    %177 = vmatpush1.bf16.msra.mxu0 %v91
    %178 = vmatprep.subr.bf16.mxu0 0
    %179 = vmatpush1.bf16.msra.mxu0 %v92
    %180 = vmatprep.subr.bf16.mxu0 0
    %181 = vmatpush1.bf16.msra.mxu0 %v93
    %182 = vmatprep.subr.bf16.mxu0 0
    %183 = vmatpush1.bf16.msra.mxu0 0
    %184 = vmatprep.subr.bf16.mxu0 0
    %185 = vmatpush1.bf16.msra.mxu0 0
    %186 = vmatprep.subr.bf16.mxu0 0
    %187 = vmatpush1.bf16.msra.mxu0 0
    %188 = vmatprep.subr.bf16.mxu0 0
    %189 = vmatpush1.bf16.msra.mxu0 0
    %190 = vmatprep.subr.bf16.mxu0 0
    %191 = vmatpush1.bf16.msra.mxu0 0
    %192 = vmatprep.subr.bf16.mxu0 0
    %193 = vmatpush1.bf16.msra.mxu0 0
    %194 = vmatprep.subr.bf16.mxu0 0
    %195 = vmatpush1.bf16.msra.mxu0 0
    %196 = vmatprep.subr.bf16.mxu0 0
    %197 = vmatpush1.bf16.msra.mxu0 0
    %198 = vmatprep.mubr.bf16.mxu0 0
    %199 = vmatmul.mubr.bf16.gmra.mrb[0].mxu0 %v165
    %v200 = vpop.f32.mrb[0].mxu0
    %v201 = vadd.f32 0.0, %v200
    %v202 = vpop.f32.mrb[0].mxu0
    %v203 = vpop.f32.mrb[0].mxu0
    %v204 = vpop.f32.mrb[0].mxu0
    %205 = vdwg.mxu0
    %207 = vrot.lane.b32.xlu0 %v201, 32
    %v208 = vpop.permute.xlu0 %207
    %vm210 = vcmask 523520
    %211 = vst.msk [vmem:[#allocation2] sm:$0xff] %vm210, %v208
    %212 = vset.pattern.permute.xlu0 8
    %213 = vperm.xlu0 %212, %v13
    %v214 = vpop.permute.xlu0 %213
    %vm215 = vcmp.eq.s32.totalorder %v31, %v214
    %216 = vset.pattern.permute.xlu0 9
    %217 = vperm.xlu0 %216, %v13
    %v218 = vpop.permute.xlu0 %217
    %vm219 = vcmp.eq.s32.totalorder %v31, %v218
    %vm220 = vmor %vm215, %vm219
    %221 = vset.pattern.permute.xlu0 10
    %222 = vperm.xlu0 %221, %v13
    %v223 = vpop.permute.xlu0 %222
    %vm224 = vcmp.eq.s32.totalorder %v31, %v223
    %vm225 = vmor %vm220, %vm224
    %226 = vset.pattern.permute.xlu0 11
    %227 = vperm.xlu0 %226, %v13
    %v228 = vpop.permute.xlu0 %227
    %vm229 = vcmp.eq.s32.totalorder %v31, %v228
    %vm230 = vmor %vm225, %vm229
    %v231 = vsel %vm230, 1, 0
    %v232 = vcvt.s32.f32 %v231
    %v233 = vpack.c.bf16 %v232, %v232
    %234 = vmatprep.subr.bf16.mxu0 0
    %235 = vmatpush1.bf16.msra.mxu0 %v86
    %236 = vmatprep.subr.bf16.mxu0 0
    %237 = vmatpush1.bf16.msra.mxu0 %v87
    %238 = vmatprep.subr.bf16.mxu0 0
    %239 = vmatpush1.bf16.msra.mxu0 %v88
    %240 = vmatprep.subr.bf16.mxu0 0
    %241 = vmatpush1.bf16.msra.mxu0 %v89
    %242 = vmatprep.subr.bf16.mxu0 0
    %243 = vmatpush1.bf16.msra.mxu0 %v90
    %244 = vmatprep.subr.bf16.mxu0 0
    %245 = vmatpush1.bf16.msra.mxu0 %v91
    %246 = vmatprep.subr.bf16.mxu0 0
    %247 = vmatpush1.bf16.msra.mxu0 %v92
    %248 = vmatprep.subr.bf16.mxu0 0
    %249 = vmatpush1.bf16.msra.mxu0 %v93
    %250 = vmatprep.subr.bf16.mxu0 0
    %251 = vmatpush1.bf16.msra.mxu0 0
    %252 = vmatprep.subr.bf16.mxu0 0
    %253 = vmatpush1.bf16.msra.mxu0 0
    %254 = vmatprep.subr.bf16.mxu0 0
    %255 = vmatpush1.bf16.msra.mxu0 0
    %256 = vmatprep.subr.bf16.mxu0 0
    %257 = vmatpush1.bf16.msra.mxu0 0
    %258 = vmatprep.subr.bf16.mxu0 0
    %259 = vmatpush1.bf16.msra.mxu0 0
    %260 = vmatprep.subr.bf16.mxu0 0
    %261 = vmatpush1.bf16.msra.mxu0 0
    %262 = vmatprep.subr.bf16.mxu0 0
    %263 = vmatpush1.bf16.msra.mxu0 0
    %264 = vmatprep.subr.bf16.mxu0 0
    %265 = vmatpush1.bf16.msra.mxu0 0
    %266 = vmatprep.mubr.bf16.mxu0 0
    %267 = vmatmul.mubr.bf16.gmra.mrb[0].mxu0 %v233
    %v268 = vpop.f32.mrb[0].mxu0
    %v269 = vadd.f32 0.0, %v268
    %v270 = vpop.f32.mrb[0].mxu0
    %v271 = vpop.f32.mrb[0].mxu0
    %v272 = vpop.f32.mrb[0].mxu0
    %273 = vdwg.mxu0
    %275 = vrot.lane.b32.xlu0 %v269, 64
    %v276 = vpop.permute.xlu0 %275
    %vm278 = vcmask 785920
    %279 = vst.msk [vmem:[#allocation2] sm:$0xff] %vm278, %v276
    %280 = vset.pattern.permute.xlu0 12
    %281 = vperm.xlu0 %280, %v13
    %v282 = vpop.permute.xlu0 %281
    %vm283 = vcmp.eq.s32.totalorder %v31, %v282
    %284 = vset.pattern.permute.xlu0 13
    %285 = vperm.xlu0 %284, %v13
    %v286 = vpop.permute.xlu0 %285
    %vm287 = vcmp.eq.s32.totalorder %v31, %v286
    %vm288 = vmor %vm283, %vm287
    %289 = vset.pattern.permute.xlu0 14
    %290 = vperm.xlu0 %289, %v13
    %v291 = vpop.permute.xlu0 %290
    %vm292 = vcmp.eq.s32.totalorder %v31, %v291
    %vm293 = vmor %vm288, %vm292
    %294 = vset.pattern.permute.xlu0 15
    %295 = vperm.xlu0 %294, %v13
    %v296 = vpop.permute.xlu0 %295
    %vm297 = vcmp.eq.s32.totalorder %v31, %v296
    %vm298 = vmor %vm293, %vm297
    %v299 = vsel %vm298, 1, 0
    %v300 = vcvt.s32.f32 %v299
    %v301 = vpack.c.bf16 %v300, %v300
    %302 = vmatprep.subr.bf16.mxu0 0
    %303 = vmatpush1.bf16.msra.mxu0 %v86
    %304 = vmatprep.subr.bf16.mxu0 0
    %305 = vmatpush1.bf16.msra.mxu0 %v87
    %306 = vmatprep.subr.bf16.mxu0 0
    %307 = vmatpush1.bf16.msra.mxu0 %v88
    %308 = vmatprep.subr.bf16.mxu0 0
    %309 = vmatpush1.bf16.msra.mxu0 %v89
    %310 = vmatprep.subr.bf16.mxu0 0
    %311 = vmatpush1.bf16.msra.mxu0 %v90
    %312 = vmatprep.subr.bf16.mxu0 0
    %313 = vmatpush1.bf16.msra.mxu0 %v91
    %314 = vmatprep.subr.bf16.mxu0 0
    %315 = vmatpush1.bf16.msra.mxu0 %v92
    %316 = vmatprep.subr.bf16.mxu0 0
    %317 = vmatpush1.bf16.msra.mxu0 %v93
    %318 = vmatprep.subr.bf16.mxu0 0
    %319 = vmatpush1.bf16.msra.mxu0 0
    %320 = vmatprep.subr.bf16.mxu0 0
    %321 = vmatpush1.bf16.msra.mxu0 0
    %322 = vmatprep.subr.bf16.mxu0 0
    %323 = vmatpush1.bf16.msra.mxu0 0
    %324 = vmatprep.subr.bf16.mxu0 0
    %325 = vmatpush1.bf16.msra.mxu0 0
    %326 = vmatprep.subr.bf16.mxu0 0
    %327 = vmatpush1.bf16.msra.mxu0 0
    %328 = vmatprep.subr.bf16.mxu0 0
    %329 = vmatpush1.bf16.msra.mxu0 0
    %330 = vmatprep.subr.bf16.mxu0 0
    %331 = vmatpush1.bf16.msra.mxu0 0
    %332 = vmatprep.subr.bf16.mxu0 0
    %333 = vmatpush1.bf16.msra.mxu0 0
    %334 = vmatprep.mubr.bf16.mxu0 0
    %335 = vmatmul.mubr.bf16.gmra.mrb[0].mxu0 %v301
    %v336 = vpop.f32.mrb[0].mxu0
    %v337 = vadd.f32 0.0, %v336
    %v338 = vpop.f32.mrb[0].mxu0
    %v339 = vpop.f32.mrb[0].mxu0
    %v340 = vpop.f32.mrb[0].mxu0
    %341 = vdwg.mxu0
    %343 = vrot.lane.b32.xlu0 %v337, 96
    %v344 = vpop.permute.xlu0 %343
    %vm346 = vcmask 1048320
    %347 = vst.msk [vmem:[#allocation2] sm:$0xff] %vm346, %v344
    // Predicated region
    $region10: #{tpu_custom_call.1} parent=1 // pred_check
      _
    $region11: #{tpu_custom_call.1} parent=1 // pred_check_branch
      %349 = sbr.rel (0) target = $region13
    $region12: #{tpu_custom_call.1} parent=1 // pred_region
      %s351 = ssub.s32 128, 128
      %352 = vsyncadd [#allocation3], %s351
      %s354 = sshll.u32 [#allocation2], 4
      %s355 = int_to_ptr.vmem [resolvable:$true] %s354
      %357 = dma.vmem_to_hbm [thread:$0]  %s355, 128, %s2, [#allocation3]
    $region13: #{tpu_custom_call.1} parent=1 // pred_fallthru
      _
    // Predicated region
    $region14: #{tpu_custom_call.1} parent=1 // pred_check
      _
    $region15: #{tpu_custom_call.1} parent=1 // pred_check_branch
      %359 = sbr.rel (0) target = $region17
    $region16: #{tpu_custom_call.1} parent=1 // pred_region
      %360 = dma.done [#allocation3], 128
    $region17: #{tpu_custom_call.1} parent=1 // pred_fallthru
      _
    %361 = vsyncpa [#allocation3], 1

</llo_original>
